<compile_context>
chip_gen: v5e
topology: v5e:2x2
jax: 0.10.0
libtpu: 0.0.40
codegen_flags: <defaults>
</compile_context>

<pallas_src>
import functools

import jax
import jax.numpy as jnp
import numpy as np
from jax.experimental import pallas as pl
from jax.experimental.pallas import tpu as pltpu

_LANE = 128      # TPU lane width (last dim)
_SUBLANE = 8     # TPU sublane width (second-to-last dim)
_NEG_BIG = -1e30 # additive mask for padded gumbel-unit columns


def _round_up(x, m):
    return ((x + m - 1) // m) * m


def gumbel_mlp_kernel(x_ref, g_ref,
                      w1_ref, b1_ref, w2_ref, b2_ref,
                      wb_ref, bb_ref, wd_ref, bd_ref,
                      logits_ref, out_ref, *, temp):
    # Matmul operand dtype follows the weights (f32, or bf16 when use_bf16);
    # accumulation is always f32, biases/elementwise math always f32.
    cdt = w1_ref.dtype

    x = x_ref[...]

    # MLP: Linear(F -> E) + ReLU, Linear(E -> E) + ReLU
    h1 = jnp.dot(x.astype(cdt), w1_ref[...],
                 preferred_element_type=jnp.float32) + b1_ref[...]
    h1 = jnp.maximum(h1, 0.0)
    h2 = jnp.dot(h1.astype(cdt), w2_ref[...],
                 preferred_element_type=jnp.float32) + b2_ref[...]
    h2 = jnp.maximum(h2, 0.0)

    # Bottleneck: Linear(E -> G).  Padded columns carry a -1e30 bias so they
    # contribute nothing to the softmax below; they are sliced off outside.
    logits = jnp.dot(h2.astype(cdt), wb_ref[...],
                     preferred_element_type=jnp.float32) + bb_ref[...]
    logits_ref[...] = logits

    # Gumbel-softmax (soft, tau=temp): softmax((logits + g) / tau, axis=-1)
    y = (logits + g_ref[...]) * (1.0 / temp)
    m = jnp.max(y, axis=-1, keepdims=True)
    e = jnp.exp(y - m)
    denom = jnp.sum(e, axis=-1, keepdims=True)
    enc = e * pl.reciprocal(denom, approx=True)   # EUP vrcp: essentially free

    # Decoder: Linear(G -> n_class).  Padded G rows of Wd are zero, so padded
    # encoding columns (which are exactly 0 anyway) add nothing.
    out_ref[...] = jnp.dot(enc.astype(cdt), wd_ref[...],
                           preferred_element_type=jnp.float32) + bd_ref[...]


def gumbel_mlp_forward(x, gumbel, params, *, temp=1.0, tile_m=512,
                       use_bf16=False):
    """x: (B, T, F_in) f32; gumbel: (B, T, G) f32.  Returns (logits, out).

    tile_m: row-tile size.  Pick large (512-1024) for big B*T; on v7x choose
    it so the grid has >= 2 blocks to shard across both TensorCores.
    use_bf16: cast matmul operands (x/activations + weights) to bf16
    (recommended on v6e/v7x); accumulation stays f32.
    """
    W1, b1, W2, b2, Wb, bb, Wd, bd = params
    B, T, F_in = x.shape
    E = W1.shape[1]
    G = Wb.shape[1]
    C = Wd.shape[1]
    N = B * T

    # Lane-dense (multiple-of-128) padded sizes for every feature dim.
    Fp = _round_up(F_in, _LANE)
    Ep = _round_up(E, _LANE)
    Gp = _round_up(G, _LANE)
    Cp = _round_up(C, _LANE)

    # Row tile: multiple of 8 sublanes, no larger than the (rounded) row count.
    tile_m = max(_SUBLANE, _round_up(min(int(tile_m), N), _SUBLANE))
    Np = _round_up(N, tile_m)
    grid = (Np // tile_m,)

    wdt = jnp.bfloat16 if use_bf16 else jnp.float32

    def pad2(a, r, c, fill=0.0):
        a = a.astype(jnp.float32)
        return jnp.pad(a, ((0, r - a.shape[0]), (0, c - a.shape[1])),
                       constant_values=fill)

    def pad_bias(a, c, fill=0.0):
        a = a.astype(jnp.float32)
        return jnp.pad(a, ((0, c - a.shape[0]),),
                       constant_values=fill).reshape(1, c)

    # Inputs (zero-padded rows/cols -> padded rows produce junk that we slice off).
    x2d = pad2(x.reshape(N, F_in), Np, Fp)
    g2d = pad2(gumbel.reshape(N, G), Np, Gp)

    # Weights padded once in the wrapper (zero fill -> numerically identical).
    W1p = pad2(W1, Fp, Ep).astype(wdt)
    W2p = pad2(W2, Ep, Ep).astype(wdt)
    Wbp = pad2(Wb, Ep, Gp).astype(wdt)
    Wdp = pad2(Wd, Gp, Cp).astype(wdt)
    b1p = pad_bias(b1, Ep)
    b2p = pad_bias(b2, Ep)
    bbp = pad_bias(bb, Gp, fill=_NEG_BIG)  # kill padded gumbel units in softmax
    bdp = pad_bias(bd, Cp)

    full = lambda shp: pl.BlockSpec(shp, lambda i: (0, 0))
    rows = lambda shp: pl.BlockSpec(shp, lambda i: (i, 0))

    logits_p, out_p = pl.pallas_call(
        functools.partial(gumbel_mlp_kernel, temp=float(temp)),
        out_shape=(
            jax.ShapeDtypeStruct((Np, Gp), jnp.float32),
            jax.ShapeDtypeStruct((Np, Cp), jnp.float32),
        ),
        grid=grid,
        in_specs=[
            rows((tile_m, Fp)),              # x rows
            rows((tile_m, Gp)),              # gumbel noise rows
            full((Fp, Ep)), full((1, Ep)),   # W1, b1
            full((Ep, Ep)), full((1, Ep)),   # W2, b2
            full((Ep, Gp)), full((1, Gp)),   # Wb, bb
            full((Gp, Cp)), full((1, Cp)),   # Wd, bd
        ],
        out_specs=(
            rows((tile_m, Gp)),              # logits (lane-dense, unmasked vst)
            rows((tile_m, Cp)),              # out    (lane-dense, unmasked vst)
        ),
        compiler_params=pltpu.CompilerParams(
            dimension_semantics=("parallel",)),
    )(x2d, g2d, W1p, b1p, W2p, b2p, Wbp, bbp, Wdp, bdp)

    logits = logits_p[:N, :G].reshape(B, T, G)
    out = out_p[:N, :C].reshape(B, T, C)
    return logits, out


def ref_forward(x, gumbel, params, temp=1.0):
    W1, b1, W2, b2, Wb, bb, Wd, bd = params
    h1 = jax.nn.relu(x @ W1 + b1)
    h2 = jax.nn.relu(h1 @ W2 + b2)
    logits = h2 @ Wb + bb
    enc = jax.nn.softmax((logits + gumbel) / temp, axis=-1)
    out = enc @ Wd + bd
    return logits, out


def init_params(key, input_size, embedding_dim, n_gumbel_units, n_class):
    """nn.Linear-style init (uniform +/- 1/sqrt(fan_in)); weights stored (in, out)."""
    ks = jax.random.split(key, 8)

    def lin(kw, kb, fan_in, fan_out):
        lim = 1.0 / np.sqrt(fan_in)
        W = jax.random.uniform(kw, (fan_in, fan_out), jnp.float32, -lim, lim)
        b = jax.random.uniform(kb, (fan_out,), jnp.float32, -lim, lim)
        return W, b

    W1, b1 = lin(ks[0], ks[1], input_size, embedding_dim)
    W2, b2 = lin(ks[2], ks[3], embedding_dim, embedding_dim)
    Wb, bb = lin(ks[4], ks[5], embedding_dim, n_gumbel_units)
    Wd, bd = lin(ks[6], ks[7], n_gumbel_units, n_class)
    return (W1, b1, W2, b2, Wb, bb, Wd, bd)


if __name__ == "__main__":
    # Small shapes consistent with the module defaults.
    B, T = 2, 8
    input_size = 80
    embedding_dim = 32
    n_gumbel_units = 40
    n_class = 65
    temp = 1.0

    key = jax.random.PRNGKey(0)
    k_x, k_p, k_g = jax.random.split(key, 3)

    x = jax.random.normal(k_x, (B, T, input_size), jnp.float32)
    params = init_params(k_p, input_size, embedding_dim, n_gumbel_units, n_class)

    # Gumbel(0,1) noise, same role as torch's F.gumbel_softmax sampling.
    u = jax.random.uniform(k_g, (B, T, n_gumbel_units), jnp.float32,
                           minval=1e-6, maxval=1.0 - 1e-6)
    gumbel = -jnp.log(-jnp.log(u))

    logits_ref, out_ref = ref_forward(x, gumbel, params, temp=temp)

    # f32 matmul path (exactness check).
    logits, out = gumbel_mlp_forward(x, gumbel, params, temp=temp, tile_m=512)
    jax.block_until_ready((logits, out))
    assert logits.shape == (B, T, n_gumbel_units)
    assert out.shape == (B, T, n_class)
    np.testing.assert_allclose(np.asarray(logits), np.asarray(logits_ref),
                               rtol=1e-4, atol=1e-4)
    # out goes through the approx (EUP) reciprocal -> slightly looser tolerance.
    np.testing.assert_allclose(np.asarray(out), np.asarray(out_ref),
                               rtol=1e-3, atol=1e-3)

    # bf16-operand fast path (v6e/v7x MXU throughput); f32 accumulation.
    logits_bf, out_bf = gumbel_mlp_forward(x, gumbel, params, temp=temp,
                                           tile_m=512, use_bf16=True)
    jax.block_until_ready((logits_bf, out_bf))
    np.testing.assert_allclose(np.asarray(logits_bf), np.asarray(logits_ref),
                               rtol=1e-1, atol=1e-1)
    np.testing.assert_allclose(np.asarray(out_bf), np.asarray(out_ref),
                               rtol=1e-1, atol=1e-1)

    # TODO(synk): masks / num_sample>1 / position_dependent decoder branches of
    # the module are not exercised by the default forward and are not implemented.
    print("KERNEL_OK")
</pallas_src>

<mosaic_0001>
module attributes {stable_mosaic.version = 11 : i64} {
  func.func @gumbel_mlp_kernel(%arg0: i32, %arg1: memref<16x128xf32, #tpu.memory_space<vmem>>, %arg2: memref<16x128xf32, #tpu.memory_space<vmem>>, %arg3: memref<128x128xf32, #tpu.memory_space<vmem>>, %arg4: memref<1x128xf32, #tpu.memory_space<vmem>>, %arg5: memref<128x128xf32, #tpu.memory_space<vmem>>, %arg6: memref<1x128xf32, #tpu.memory_space<vmem>>, %arg7: memref<128x128xf32, #tpu.memory_space<vmem>>, %arg8: memref<1x128xf32, #tpu.memory_space<vmem>>, %arg9: memref<128x128xf32, #tpu.memory_space<vmem>>, %arg10: memref<1x128xf32, #tpu.memory_space<vmem>>, %arg11: memref<16x128xf32, #tpu.memory_space<vmem>>, %arg12: memref<16x128xf32, #tpu.memory_space<vmem>>) attributes {dimension_semantics = [#tpu.dimension_semantics<parallel>], iteration_bounds = array<i64: 1>, scalar_prefetch = 0 : i64, scratch_operands = 0 : i64, tpu.core_type = #tpu.core_type<tc>, window_params = [{transform_indices = @transform_0, window_bounds = array<i64: 16, 128>}, {transform_indices = @transform_1, window_bounds = array<i64: 16, 128>}, {pipeline_mode = #tpu.pipeline_mode<synchronous>, transform_indices = @transform_2, window_bounds = array<i64: 128, 128>}, {pipeline_mode = #tpu.pipeline_mode<synchronous>, transform_indices = @transform_3, window_bounds = array<i64: 1, 128>}, {pipeline_mode = #tpu.pipeline_mode<synchronous>, transform_indices = @transform_4, window_bounds = array<i64: 128, 128>}, {pipeline_mode = #tpu.pipeline_mode<synchronous>, transform_indices = @transform_5, window_bounds = array<i64: 1, 128>}, {pipeline_mode = #tpu.pipeline_mode<synchronous>, transform_indices = @transform_6, window_bounds = array<i64: 128, 128>}, {pipeline_mode = #tpu.pipeline_mode<synchronous>, transform_indices = @transform_7, window_bounds = array<i64: 1, 128>}, {pipeline_mode = #tpu.pipeline_mode<synchronous>, transform_indices = @transform_8, window_bounds = array<i64: 128, 128>}, {pipeline_mode = #tpu.pipeline_mode<synchronous>, transform_indices = @transform_9, window_bounds = array<i64: 1, 128>}, {transform_indices = @transform_10, window_bounds = array<i64: 16, 128>}, {transform_indices = @transform_11, window_bounds = array<i64: 16, 128>}]} {
    %c0 = arith.constant 0 : index
    %c0_0 = arith.constant 0 : index
    %0 = vector.load %arg1[%c0, %c0_0] : memref<16x128xf32, #tpu.memory_space<vmem>>, vector<16x128xf32>
    %c0_1 = arith.constant 0 : index
    %c0_2 = arith.constant 0 : index
    %1 = vector.load %arg3[%c0_1, %c0_2] : memref<128x128xf32, #tpu.memory_space<vmem>>, vector<128x128xf32>
    %cst = arith.constant dense<0.000000e+00> : vector<16x128xf32>
    %2 = tpu.matmul %0, %1, %cst {dimension_numbers = #tpu.dot_dimension_numbers<[1], [0], [0], [1], [0, 0, 1, 1], [], []>} : vector<16x128xf32>, vector<128x128xf32>, vector<16x128xf32> -> vector<16x128xf32>
    %c0_3 = arith.constant 0 : index
    %c0_4 = arith.constant 0 : index
    %3 = vector.load %arg4[%c0_3, %c0_4] : memref<1x128xf32, #tpu.memory_space<vmem>>, vector<1x128xf32>
    %4 = vector.broadcast %3 : vector<1x128xf32> to vector<16x128xf32>
    %5 = arith.addf %2, %4 : vector<16x128xf32>
    %cst_5 = arith.constant 0.000000e+00 : f32
    %6 = vector.broadcast %cst_5 : f32 to vector<16x128xf32>
    %7 = arith.maximumf %5, %6 : vector<16x128xf32>
    %c0_6 = arith.constant 0 : index
    %c0_7 = arith.constant 0 : index
    %8 = vector.load %arg5[%c0_6, %c0_7] : memref<128x128xf32, #tpu.memory_space<vmem>>, vector<128x128xf32>
    %cst_8 = arith.constant dense<0.000000e+00> : vector<16x128xf32>
    %9 = tpu.matmul %7, %8, %cst_8 {dimension_numbers = #tpu.dot_dimension_numbers<[1], [0], [0], [1], [0, 0, 1, 1], [], []>} : vector<16x128xf32>, vector<128x128xf32>, vector<16x128xf32> -> vector<16x128xf32>
    %c0_9 = arith.constant 0 : index
    %c0_10 = arith.constant 0 : index
    %10 = vector.load %arg6[%c0_9, %c0_10] : memref<1x128xf32, #tpu.memory_space<vmem>>, vector<1x128xf32>
    %11 = vector.broadcast %10 : vector<1x128xf32> to vector<16x128xf32>
    %12 = arith.addf %9, %11 : vector<16x128xf32>
    %cst_11 = arith.constant 0.000000e+00 : f32
    %13 = vector.broadcast %cst_11 : f32 to vector<16x128xf32>
    %14 = arith.maximumf %12, %13 : vector<16x128xf32>
    %c0_12 = arith.constant 0 : index
    %c0_13 = arith.constant 0 : index
    %15 = vector.load %arg7[%c0_12, %c0_13] : memref<128x128xf32, #tpu.memory_space<vmem>>, vector<128x128xf32>
    %cst_14 = arith.constant dense<0.000000e+00> : vector<16x128xf32>
    %16 = tpu.matmul %14, %15, %cst_14 {dimension_numbers = #tpu.dot_dimension_numbers<[1], [0], [0], [1], [0, 0, 1, 1], [], []>} : vector<16x128xf32>, vector<128x128xf32>, vector<16x128xf32> -> vector<16x128xf32>
    %c0_15 = arith.constant 0 : index
    %c0_16 = arith.constant 0 : index
    %17 = vector.load %arg8[%c0_15, %c0_16] : memref<1x128xf32, #tpu.memory_space<vmem>>, vector<1x128xf32>
    %18 = vector.broadcast %17 : vector<1x128xf32> to vector<16x128xf32>
    %19 = arith.addf %16, %18 : vector<16x128xf32>
    %c0_17 = arith.constant 0 : index
    %c0_18 = arith.constant 0 : index
    %20 = vector.load %arg11[%c0_17, %c0_18] : memref<16x128xf32, #tpu.memory_space<vmem>>, vector<16x128xf32>
    tpu.vector_store %arg11[%c0_17, %c0_18], %19 {strides = array<i32>} : memref<16x128xf32, #tpu.memory_space<vmem>>, vector<16x128xf32>,
    %c0_19 = arith.constant 0 : index
    %c0_20 = arith.constant 0 : index
    %21 = vector.load %arg2[%c0_19, %c0_20] : memref<16x128xf32, #tpu.memory_space<vmem>>, vector<16x128xf32>
    %22 = arith.addf %19, %21 : vector<16x128xf32>
    %cst_21 = arith.constant 1.000000e+00 : f32
    %23 = vector.broadcast %cst_21 : f32 to vector<16x128xf32>
    %24 = arith.mulf %22, %23 : vector<16x128xf32>
    %cst_22 = arith.constant dense<0xFF800000> : vector<16xf32>
    %25 = vector.multi_reduction <maximumf>, %24, %cst_22 [1] : vector<16x128xf32> to vector<16xf32>
    %26 = vector.shape_cast %25 : vector<16xf32> to vector<16x1xf32>
    %27 = vector.broadcast %26 : vector<16x1xf32> to vector<16x128xf32>
    %28 = arith.subf %24, %27 : vector<16x128xf32>
    %29 = math.exp %28 : vector<16x128xf32>
    %cst_23 = arith.constant dense<0.000000e+00> : vector<16xf32>
    %30 = vector.multi_reduction <add>, %29, %cst_23 [1] : vector<16x128xf32> to vector<16xf32>
    %31 = vector.shape_cast %30 : vector<16xf32> to vector<16x1xf32>
    %32 = tpu.reciprocal %31 {approx = true} : vector<16x1xf32> -> vector<16x1xf32>
    %33 = vector.broadcast %32 : vector<16x1xf32> to vector<16x128xf32>
    %34 = arith.mulf %29, %33 : vector<16x128xf32>
    %c0_24 = arith.constant 0 : index
    %c0_25 = arith.constant 0 : index
    %35 = vector.load %arg9[%c0_24, %c0_25] : memref<128x128xf32, #tpu.memory_space<vmem>>, vector<128x128xf32>
    %cst_26 = arith.constant dense<0.000000e+00> : vector<16x128xf32>
    %36 = tpu.matmul %34, %35, %cst_26 {dimension_numbers = #tpu.dot_dimension_numbers<[1], [0], [0], [1], [0, 0, 1, 1], [], []>} : vector<16x128xf32>, vector<128x128xf32>, vector<16x128xf32> -> vector<16x128xf32>
    %c0_27 = arith.constant 0 : index
    %c0_28 = arith.constant 0 : index
    %37 = vector.load %arg10[%c0_27, %c0_28] : memref<1x128xf32, #tpu.memory_space<vmem>>, vector<1x128xf32>
    %38 = vector.broadcast %37 : vector<1x128xf32> to vector<16x128xf32>
    %39 = arith.addf %36, %38 : vector<16x128xf32>
    %c0_29 = arith.constant 0 : index
    %c0_30 = arith.constant 0 : index
    %40 = vector.load %arg12[%c0_29, %c0_30] : memref<16x128xf32, #tpu.memory_space<vmem>>, vector<16x128xf32>
    tpu.vector_store %arg12[%c0_29, %c0_30], %39 {strides = array<i32>} : memref<16x128xf32, #tpu.memory_space<vmem>>, vector<16x128xf32>,
    return
  }
  func.func @transform_0(%arg0: i32) -> (i32, i32) {
    %c0_i32 = arith.constant 0 : i32
    %c0_i32_0 = arith.constant 0 : i32
    return %arg0, %c0_i32 : i32, i32
  }
  func.func @transform_1(%arg0: i32) -> (i32, i32) {
    %c0_i32 = arith.constant 0 : i32
    %c0_i32_0 = arith.constant 0 : i32
    return %arg0, %c0_i32 : i32, i32
  }
  func.func @transform_2(%arg0: i32) -> (i32, i32) {
    %c0_i32 = arith.constant 0 : i32
    %c0_i32_0 = arith.constant 0 : i32
    %c0_i32_1 = arith.constant 0 : i32
    return %c0_i32, %c0_i32_0 : i32, i32
  }
  func.func @transform_3(%arg0: i32) -> (i32, i32) {
    %c0_i32 = arith.constant 0 : i32
    %c0_i32_0 = arith.constant 0 : i32
    %c0_i32_1 = arith.constant 0 : i32
    return %c0_i32, %c0_i32_0 : i32, i32
  }
  func.func @transform_4(%arg0: i32) -> (i32, i32) {
    %c0_i32 = arith.constant 0 : i32
    %c0_i32_0 = arith.constant 0 : i32
    %c0_i32_1 = arith.constant 0 : i32
    return %c0_i32, %c0_i32_0 : i32, i32
  }
  func.func @transform_5(%arg0: i32) -> (i32, i32) {
    %c0_i32 = arith.constant 0 : i32
    %c0_i32_0 = arith.constant 0 : i32
    %c0_i32_1 = arith.constant 0 : i32
    return %c0_i32, %c0_i32_0 : i32, i32
  }
  func.func @transform_6(%arg0: i32) -> (i32, i32) {
    %c0_i32 = arith.constant 0 : i32
    %c0_i32_0 = arith.constant 0 : i32
    %c0_i32_1 = arith.constant 0 : i32
    return %c0_i32, %c0_i32_0 : i32, i32
  }
  func.func @transform_7(%arg0: i32) -> (i32, i32) {
    %c0_i32 = arith.constant 0 : i32
    %c0_i32_0 = arith.constant 0 : i32
    %c0_i32_1 = arith.constant 0 : i32
    return %c0_i32, %c0_i32_0 : i32, i32
  }
  func.func @transform_8(%arg0: i32) -> (i32, i32) {
    %c0_i32 = arith.constant 0 : i32
    %c0_i32_0 = arith.constant 0 : i32
    %c0_i32_1 = arith.constant 0 : i32
    return %c0_i32, %c0_i32_0 : i32, i32
  }
  func.func @transform_9(%arg0: i32) -> (i32, i32) {
    %c0_i32 = arith.constant 0 : i32
    %c0_i32_0 = arith.constant 0 : i32
    %c0_i32_1 = arith.constant 0 : i32
    return %c0_i32, %c0_i32_0 : i32, i32
  }
  func.func @transform_10(%arg0: i32) -> (i32, i32) {
    %c0_i32 = arith.constant 0 : i32
    %c0_i32_0 = arith.constant 0 : i32
    return %arg0, %c0_i32 : i32, i32
  }
  func.func @transform_11(%arg0: i32) -> (i32, i32) {
    %c0_i32 = arith.constant 0 : i32
    %c0_i32_0 = arith.constant 0 : i32
    return %arg0, %c0_i32 : i32, i32
  }
}

</mosaic_0001>

<llo_original>
// kernel: tpu_custom_call.1
$region0: #{tpu_custom_call.1}
  #allocation0 [shape = 'u32[]', space=smem, size = 0x4, offset = 0x4, fixed_abs, tag = 'smem constant byte address 0x4 - core index']
  #allocation1 [shape = 'u32[72,128]{1,0:T(1,128)}', space=vmem, size = 0x9000, scoped, tag = 'internal scratch']
  %s0 = inlined_call_operand.hbm [shape: f32[16,128], index: 0, kind: input, shape index: {}]
  %s1 = inlined_call_operand.hbm [shape: f32[16,128], index: 1, kind: input, shape index: {}]
  %s2 = inlined_call_operand.hbm [shape: f32[128,128], index: 2, kind: input, shape index: {}]
  %s3 = inlined_call_operand.vmem [shape: f32[1,128], index: 3, kind: input, shape index: {}]
  %s4 = inlined_call_operand.hbm [shape: f32[128,128], index: 4, kind: input, shape index: {}]
  %s5 = inlined_call_operand.vmem [shape: f32[1,128], index: 5, kind: input, shape index: {}]
  %s6 = inlined_call_operand.hbm [shape: f32[128,128], index: 6, kind: input, shape index: {}]
  %s7 = inlined_call_operand.vmem [shape: f32[1,128], index: 7, kind: input, shape index: {}]
  %s8 = inlined_call_operand.hbm [shape: f32[128,128], index: 8, kind: input, shape index: {}]
  %s9 = inlined_call_operand.vmem [shape: f32[1,128], index: 9, kind: input, shape index: {}]
  %s10 = inlined_call_operand.hbm [shape: f32[16,128], index: 10, kind: output, shape index: {0}]
  %s11 = inlined_call_operand.hbm [shape: f32[16,128], index: 11, kind: output, shape index: {1}]
  %12 = xla_tuple %s10, %s11
  %s13 = sld [smem:[#allocation0]]
  $region82: #{tpu_custom_call.1} parent=0
    _
  %s15 = ssub.s32 1, %s13
  %s16 = scalar_select 0, %s15, %s13
  $region1: #{tpu_custom_call.1} parent=0
    #allocation2 [shape = 'u8[8192]{0}', space=vmem, size = 0x2000, scoped, tag = 'input window, operand 0, single buffered']
    #allocation3 [shape = 's32[1]{0}', space=sflag, size = 0x4, scoped, tag = 'scoped memory for tpu_custom_call.1']
    #allocation4 [shape = 's32[1]{0}', space=sflag, size = 0x4, scoped, tag = 'scoped memory for tpu_custom_call.1']
    #allocation5 [shape = 'u8[8192]{0}', space=vmem, size = 0x2000, scoped, tag = 'input window, operand 1, single buffered']
    #allocation6 [shape = 's32[1]{0}', space=sflag, size = 0x4, scoped, tag = 'scoped memory for tpu_custom_call.1']
    #allocation7 [shape = 'u8[65536]{0}', space=vmem, size = 0x10000, scoped, tag = 'input window, operand 2, single buffered']
    #allocation8 [shape = 'u8[65536]{0}', space=vmem, size = 0x10000, scoped, tag = 'input window, operand 4, single buffered']
    #allocation9 [shape = 's32[1]{0}', space=sflag, size = 0x4, scoped, tag = 'scoped memory for tpu_custom_call.1']
    #allocation10 [shape = 'u8[65536]{0}', space=vmem, size = 0x10000, scoped, tag = 'input window, operand 6, single buffered']
    #allocation11 [shape = 'u8[65536]{0}', space=vmem, size = 0x10000, scoped, tag = 'input window, operand 8, single buffered']
    #allocation12 [shape = 's32[1]{0}', space=sflag, size = 0x4, scoped, tag = 'scoped memory for tpu_custom_call.1']
    #allocation13 [shape = 'u8[8192]{0}', space=vmem, size = 0x2000, scoped, tag = 'output window, operand 0, single buffered']
    #allocation14 [shape = 'u8[8192]{0}', space=vmem, size = 0x2000, scoped, tag = 'output window, operand 1, single buffered']
    #allocation15 [shape = 's32[1]{0}', space=sflag, size = 0x4, scoped, tag = 'scoped memory for tpu_custom_call.1']
    %17 = vsyncpa [#allocation3], 0
    %18 = vsyncpa [#allocation6], 0
    %19 = vsyncpa [#allocation9], 0
    %20 = vsyncpa [#allocation12], 0
    %21 = vsyncpa [#allocation4], 0
    %22 = vsyncpa [#allocation15], 0
    // Predicated region
    $region2: #{tpu_custom_call.1} parent=1 // pred_check
      _
    $region3: #{tpu_custom_call.1} parent=1 // pred_check_branch
      %24 = sbr.rel (0) target = $region5
    $region4: #{tpu_custom_call.1} parent=1 // pred_region
      %26 = vsyncadd [#allocation3], 0
      %s27 = sshll.u32 %s0, 4
      %s28 = int_to_ptr.hbm [resolvable:$true] %s27
      %s29 = sshll.u32 [#allocation2], 4
      %s30 = int_to_ptr.vmem [resolvable:$true] %s29
      %35 = dma.hbm_to_vmem [thread:$0]  %s28, 256, %s30, [#allocation3], 128, 128, 8
    $region5: #{tpu_custom_call.1} parent=1 // pred_fallthru
      _
    // Predicated region
    $region6: #{tpu_custom_call.1} parent=1 // pred_check
      _
    $region7: #{tpu_custom_call.1} parent=1 // pred_check_branch
      %37 = sbr.rel (0) target = $region9
    $region8: #{tpu_custom_call.1} parent=1 // pred_region
      %39 = vsyncadd [#allocation6], 0
      %s40 = sshll.u32 %s1, 4
      %s41 = int_to_ptr.hbm [resolvable:$true] %s40
      %s42 = sshll.u32 [#allocation5], 4
      %s43 = int_to_ptr.vmem [resolvable:$true] %s42
      %48 = dma.hbm_to_vmem [thread:$0]  %s41, 256, %s43, [#allocation6], 128, 128, 8
    $region9: #{tpu_custom_call.1} parent=1 // pred_fallthru
      _
    // Predicated region
    $region10: #{tpu_custom_call.1} parent=1 // pred_check
      _
    $region11: #{tpu_custom_call.1} parent=1 // pred_check_branch
      %50 = sbr.rel (0) target = $region13
    $region12: #{tpu_custom_call.1} parent=1 // pred_region
      %52 = vsyncadd [#allocation6], 0
      %s53 = sshll.u32 %s2, 4
      %s54 = int_to_ptr.hbm [resolvable:$true] %s53
      %s55 = sshll.u32 [#allocation7], 4
      %s56 = int_to_ptr.vmem [resolvable:$true] %s55
      %61 = dma.hbm_to_vmem [thread:$0]  %s54, 2048, %s56, [#allocation6], 128, 128, 8
    $region13: #{tpu_custom_call.1} parent=1 // pred_fallthru
      _
    // Predicated region
    $region14: #{tpu_custom_call.1} parent=1 // pred_check
      _
    $region15: #{tpu_custom_call.1} parent=1 // pred_check_branch
      %63 = sbr.rel (0) target = $region17
    $region16: #{tpu_custom_call.1} parent=1 // pred_region
      _
    $region17: #{tpu_custom_call.1} parent=1 // pred_fallthru
      _
    // Predicated region
    $region18: #{tpu_custom_call.1} parent=1 // pred_check
      _
    $region19: #{tpu_custom_call.1} parent=1 // pred_check_branch
      %65 = sbr.rel (0) target = $region21
    $region20: #{tpu_custom_call.1} parent=1 // pred_region
      %67 = vsyncadd [#allocation9], 0
      %s68 = sshll.u32 %s4, 4
      %s69 = int_to_ptr.hbm [resolvable:$true] %s68
      %s70 = sshll.u32 [#allocation8], 4
      %s71 = int_to_ptr.vmem [resolvable:$true] %s70
      %76 = dma.hbm_to_vmem [thread:$0]  %s69, 2048, %s71, [#allocation9], 128, 128, 8
    $region21: #{tpu_custom_call.1} parent=1 // pred_fallthru
      _
    // Predicated region
    $region22: #{tpu_custom_call.1} parent=1 // pred_check
      _
    $region23: #{tpu_custom_call.1} parent=1 // pred_check_branch
      %78 = sbr.rel (0) target = $region25
    $region24: #{tpu_custom_call.1} parent=1 // pred_region
      _
    $region25: #{tpu_custom_call.1} parent=1 // pred_fallthru
      _
    // Predicated region
    $region26: #{tpu_custom_call.1} parent=1 // pred_check
      _
    $region27: #{tpu_custom_call.1} parent=1 // pred_check_branch
      %80 = sbr.rel (0) target = $region29
    $region28: #{tpu_custom_call.1} parent=1 // pred_region
      %82 = vsyncadd [#allocation9], 0
      %s83 = sshll.u32 %s6, 4
      %s84 = int_to_ptr.hbm [resolvable:$true] %s83
      %s85 = sshll.u32 [#allocation10], 4
      %s86 = int_to_ptr.vmem [resolvable:$true] %s85
      %91 = dma.hbm_to_vmem [thread:$0]  %s84, 2048, %s86, [#allocation9], 128, 128, 8
    $region29: #{tpu_custom_call.1} parent=1 // pred_fallthru
      _
    // Predicated region
    $region30: #{tpu_custom_call.1} parent=1 // pred_check
      _
    $region31: #{tpu_custom_call.1} parent=1 // pred_check_branch
      %93 = sbr.rel (0) target = $region33
    $region32: #{tpu_custom_call.1} parent=1 // pred_region
      _
    $region33: #{tpu_custom_call.1} parent=1 // pred_fallthru
      _
    // Predicated region
    $region34: #{tpu_custom_call.1} parent=1 // pred_check
      _
    $region35: #{tpu_custom_call.1} parent=1 // pred_check_branch
      %95 = sbr.rel (0) target = $region37
    $region36: #{tpu_custom_call.1} parent=1 // pred_region
      %97 = vsyncadd [#allocation12], 0
      %s98 = sshll.u32 %s8, 4
      %s99 = int_to_ptr.hbm [resolvable:$true] %s98
      %s100 = sshll.u32 [#allocation11], 4
      %s101 = int_to_ptr.vmem [resolvable:$true] %s100
      %106 = dma.hbm_to_vmem [thread:$0]  %s99, 2048, %s101, [#allocation12], 128, 128, 8
    $region37: #{tpu_custom_call.1} parent=1 // pred_fallthru
      _
    // Predicated region
    $region38: #{tpu_custom_call.1} parent=1 // pred_check
      _
    $region39: #{tpu_custom_call.1} parent=1 // pred_check_branch
      %108 = sbr.rel (0) target = $region41
    $region40: #{tpu_custom_call.1} parent=1 // pred_region
      _
    $region41: #{tpu_custom_call.1} parent=1 // pred_fallthru
      _
    // Predicated region
    $region42: #{tpu_custom_call.1} parent=1 // pred_check
      _
    $region43: #{tpu_custom_call.1} parent=1 // pred_check_branch
      %110 = sbr.rel (0) target = $region45
    $region44: #{tpu_custom_call.1} parent=1 // pred_region
      %112 = dma.done [#allocation3], 256
    $region45: #{tpu_custom_call.1} parent=1 // pred_fallthru
      _
    // Predicated region
    $region46: #{tpu_custom_call.1} parent=1 // pred_check
      _
    $region47: #{tpu_custom_call.1} parent=1 // pred_check_branch
      %114 = sbr.rel (0) target = $region49
    $region48: #{tpu_custom_call.1} parent=1 // pred_region
      %116 = dma.done [#allocation6], 256
    $region49: #{tpu_custom_call.1} parent=1 // pred_fallthru
      _
    // Predicated region
    $region50: #{tpu_custom_call.1} parent=1 // pred_check
      _
    $region51: #{tpu_custom_call.1} parent=1 // pred_check_branch
      %118 = sbr.rel (0) target = $region53
    $region52: #{tpu_custom_call.1} parent=1 // pred_region
      %120 = dma.done [#allocation6], 2048
    $region53: #{tpu_custom_call.1} parent=1 // pred_fallthru
      _
    // Predicated region
    $region54: #{tpu_custom_call.1} parent=1 // pred_check
      _
    $region55: #{tpu_custom_call.1} parent=1 // pred_check_branch
      %122 = sbr.rel (0) target = $region57
    $region56: #{tpu_custom_call.1} parent=1 // pred_region
      %124 = dma.done [#allocation9], 2048
    $region57: #{tpu_custom_call.1} parent=1 // pred_fallthru
      _
    // Predicated region
    $region58: #{tpu_custom_call.1} parent=1 // pred_check
      _
    $region59: #{tpu_custom_call.1} parent=1 // pred_check_branch
      %126 = sbr.rel (0) target = $region61
    $region60: #{tpu_custom_call.1} parent=1 // pred_region
      %128 = dma.done [#allocation9], 2048
    $region61: #{tpu_custom_call.1} parent=1 // pred_fallthru
      _
    // Predicated region
    $region62: #{tpu_custom_call.1} parent=1 // pred_check
      _
    $region63: #{tpu_custom_call.1} parent=1 // pred_check_branch
      %130 = sbr.rel (0) target = $region65
    $region64: #{tpu_custom_call.1} parent=1 // pred_region
      %132 = dma.done [#allocation12], 2048
    $region65: #{tpu_custom_call.1} parent=1 // pred_fallthru
      _
    %v133 = vld [vmem:[#allocation2] sm:$0xff]
    %v134 = vld [vmem:[#allocation2 + $0x8] sm:$0xff]
    %v135 = vld [vmem:[#allocation7] sm:$0xff]
    %v136 = vld [vmem:[#allocation7 + $0x8] sm:$0xff]
    %v137 = vld [vmem:[#allocation7 + $0x10] sm:$0xff]
    %v138 = vld [vmem:[#allocation7 + $0x18] sm:$0xff]
    %v139 = vld [vmem:[#allocation7 + $0x20] sm:$0xff]
    %v140 = vld [vmem:[#allocation7 + $0x28] sm:$0xff]
    %v141 = vld [vmem:[#allocation7 + $0x30] sm:$0xff]
    %v142 = vld [vmem:[#allocation7 + $0x38] sm:$0xff]
    %v143 = vld [vmem:[#allocation7 + $0x40] sm:$0xff]
    %v144 = vld [vmem:[#allocation7 + $0x48] sm:$0xff]
    %v145 = vld [vmem:[#allocation7 + $0x50] sm:$0xff]
    %v146 = vld [vmem:[#allocation7 + $0x58] sm:$0xff]
    %v147 = vld [vmem:[#allocation7 + $0x60] sm:$0xff]
    %v148 = vld [vmem:[#allocation7 + $0x68] sm:$0xff]
    %v149 = vld [vmem:[#allocation7 + $0x70] sm:$0xff]
    %v150 = vld [vmem:[#allocation7 + $0x78] sm:$0xff]
    %v151 = vld [vmem:[%s3] sm:$0x1]
    %v153 = vperm.slane %v151, 0
    %155 = vmatpush.msra.mxu0 %v150
    %156 = vmatpush.msra.mxu0 %v149
    %157 = vmatpush.msra.mxu0 %v148
    %158 = vmatpush.msra.mxu0 %v147
    %159 = vmatpush.msra.mxu0 %v146
    %160 = vmatpush.msra.mxu0 %v145
    %161 = vmatpush.msra.mxu0 %v144
    %162 = vmatpush.msra.mxu0 %v143
    %163 = vmatpush.msra.mxu0 %v142
    %164 = vmatpush.msra.mxu0 %v141
    %165 = vmatpush.msra.mxu0 %v140
    %166 = vmatpush.msra.mxu0 %v139
    %167 = vmatpush.msra.mxu0 %v138
    %168 = vmatpush.msra.mxu0 %v137
    %169 = vmatpush.msra.mxu0 %v136
    %170 = vmatpush.msra.mxu0 %v135
    %171 = vmatmul.f32.gmra.mxu0 %v133
    %v172 = vpop.f32.mrf.mxu0
    %v173 = vadd.f32 %v153, %v172
    %174 = vmatmul.f32.gmra.mxu0 %v134
    %v175 = vpop.f32.mrf.mxu0
    %v176 = vadd.f32 %v153, %v175
    %177 = vdwg.mxu0
    %v178 = vmax.f32 %v173, 0.0
    %v179 = vmax.f32 %v176, 0.0
    %v180 = vld [vmem:[#allocation8] sm:$0xff]
    %v181 = vld [vmem:[#allocation8 + $0x8] sm:$0xff]
    %v182 = vld [vmem:[#allocation8 + $0x10] sm:$0xff]
    %v183 = vld [vmem:[#allocation8 + $0x18] sm:$0xff]
    %v184 = vld [vmem:[#allocation8 + $0x20] sm:$0xff]
    %v185 = vld [vmem:[#allocation8 + $0x28] sm:$0xff]
    %v186 = vld [vmem:[#allocation8 + $0x30] sm:$0xff]
    %v187 = vld [vmem:[#allocation8 + $0x38] sm:$0xff]
    %v188 = vld [vmem:[#allocation8 + $0x40] sm:$0xff]
    %v189 = vld [vmem:[#allocation8 + $0x48] sm:$0xff]
    %v190 = vld [vmem:[#allocation8 + $0x50] sm:$0xff]
    %v191 = vld [vmem:[#allocation8 + $0x58] sm:$0xff]
    %v192 = vld [vmem:[#allocation8 + $0x60] sm:$0xff]
    %v193 = vld [vmem:[#allocation8 + $0x68] sm:$0xff]
    %v194 = vld [vmem:[#allocation8 + $0x70] sm:$0xff]
    %v195 = vld [vmem:[#allocation8 + $0x78] sm:$0xff]
    %v196 = vld [vmem:[%s5] sm:$0x1]
    %v198 = vperm.slane %v196, 0
    %200 = vmatpush.msra.mxu0 %v195
    %201 = vmatpush.msra.mxu0 %v194
    %202 = vmatpush.msra.mxu0 %v193
    %203 = vmatpush.msra.mxu0 %v192
    %204 = vmatpush.msra.mxu0 %v191
    %205 = vmatpush.msra.mxu0 %v190
    %206 = vmatpush.msra.mxu0 %v189
    %207 = vmatpush.msra.mxu0 %v188
    %208 = vmatpush.msra.mxu0 %v187
    %209 = vmatpush.msra.mxu0 %v186
    %210 = vmatpush.msra.mxu0 %v185
    %211 = vmatpush.msra.mxu0 %v184
    %212 = vmatpush.msra.mxu0 %v183
    %213 = vmatpush.msra.mxu0 %v182
    %214 = vmatpush.msra.mxu0 %v181
    %215 = vmatpush.msra.mxu0 %v180
    %216 = vmatmul.f32.gmra.mxu0 %v178
    %v217 = vpop.f32.mrf.mxu0
    %v218 = vadd.f32 %v198, %v217
    %219 = vmatmul.f32.gmra.mxu0 %v179
    %v220 = vpop.f32.mrf.mxu0
    %v221 = vadd.f32 %v198, %v220
    %222 = vdwg.mxu0
    %v223 = vmax.f32 %v218, 0.0
    %v224 = vmax.f32 %v221, 0.0
    %v225 = vld [vmem:[#allocation10] sm:$0xff]
    %v226 = vld [vmem:[#allocation10 + $0x8] sm:$0xff]
    %v227 = vld [vmem:[#allocation10 + $0x10] sm:$0xff]
    %v228 = vld [vmem:[#allocation10 + $0x18] sm:$0xff]
    %v229 = vld [vmem:[#allocation10 + $0x20] sm:$0xff]
    %v230 = vld [vmem:[#allocation10 + $0x28] sm:$0xff]
    %v231 = vld [vmem:[#allocation10 + $0x30] sm:$0xff]
    %v232 = vld [vmem:[#allocation10 + $0x38] sm:$0xff]
    %v233 = vld [vmem:[#allocation10 + $0x40] sm:$0xff]
    %v234 = vld [vmem:[#allocation10 + $0x48] sm:$0xff]
    %v235 = vld [vmem:[#allocation10 + $0x50] sm:$0xff]
    %v236 = vld [vmem:[#allocation10 + $0x58] sm:$0xff]
    %v237 = vld [vmem:[#allocation10 + $0x60] sm:$0xff]
    %v238 = vld [vmem:[#allocation10 + $0x68] sm:$0xff]
    %v239 = vld [vmem:[#allocation10 + $0x70] sm:$0xff]
    %v240 = vld [vmem:[#allocation10 + $0x78] sm:$0xff]
    %v241 = vld [vmem:[%s7] sm:$0x1]
    %v243 = vperm.slane %v241, 0
    %245 = vmatpush.msra.mxu0 %v240
    %246 = vmatpush.msra.mxu0 %v239
    %247 = vmatpush.msra.mxu0 %v238
    %248 = vmatpush.msra.mxu0 %v237
    %249 = vmatpush.msra.mxu0 %v236
    %250 = vmatpush.msra.mxu0 %v235
    %251 = vmatpush.msra.mxu0 %v234
    %252 = vmatpush.msra.mxu0 %v233
    %253 = vmatpush.msra.mxu0 %v232
    %254 = vmatpush.msra.mxu0 %v231
    %255 = vmatpush.msra.mxu0 %v230
    %256 = vmatpush.msra.mxu0 %v229
    %257 = vmatpush.msra.mxu0 %v228
    %258 = vmatpush.msra.mxu0 %v227
    %259 = vmatpush.msra.mxu0 %v226
    %260 = vmatpush.msra.mxu0 %v225
    %261 = vmatmul.f32.gmra.mxu0 %v223
    %v262 = vpop.f32.mrf.mxu0
    %v263 = vadd.f32 %v243, %v262
    %264 = vmatmul.f32.gmra.mxu0 %v224
    %v265 = vpop.f32.mrf.mxu0
    %v266 = vadd.f32 %v243, %v265
    %267 = vdwg.mxu0
    %268 = vst [vmem:[#allocation13] sm:$0xff] %v263
    %269 = vst [vmem:[#allocation13 + $0x8] sm:$0xff] %v266
    %v270 = vld [vmem:[#allocation5] sm:$0xff]
    %v271 = vld [vmem:[#allocation5 + $0x8] sm:$0xff]
    %v272 = vadd.f32 %v263, %v270
    %v273 = vadd.f32 %v266, %v271
    %274 = vmax.xlane.f32.xlu0 %v272
    %v275 = vpop.xlane.xlu0 %274
    %276 = vmax.xlane.f32.xlu0 %v273
    %v277 = vpop.xlane.xlu0 %276
    %v278 = vsub.f32 %v272, %v275
    %v279 = vsub.f32 %v273, %v277
    %v280 = vmul.f32 %v278, 1.442695
    %v281 = vpow.pop %v280
    %v282 = vmul.f32 %v279, 1.442695
    %v283 = vpow.pop %v282
    %284 = vadd.xlane.f32.xlu0 %v281
    %v285 = vpop.xlane.xlu0 %284
    %286 = vadd.xlane.f32.xlu0 %v283
    %v287 = vpop.xlane.xlu0 %286
    %v288 = vrcp.pop %v285
    %v289 = vrcp.pop %v287
    %v290 = vmul.f32 %v281, %v288
    %v291 = vmul.f32 %v283, %v289
    %v292 = vld [vmem:[#allocation11] sm:$0xff]
    %v293 = vld [vmem:[#allocation11 + $0x8] sm:$0xff]
    %v294 = vld [vmem:[#allocation11 + $0x10] sm:$0xff]
    %v295 = vld [vmem:[#allocation11 + $0x18] sm:$0xff]
    %v296 = vld [vmem:[#allocation11 + $0x20] sm:$0xff]
    %v297 = vld [vmem:[#allocation11 + $0x28] sm:$0xff]
    %v298 = vld [vmem:[#allocation11 + $0x30] sm:$0xff]
    %v299 = vld [vmem:[#allocation11 + $0x38] sm:$0xff]
    %v300 = vld [vmem:[#allocation11 + $0x40] sm:$0xff]
    %v301 = vld [vmem:[#allocation11 + $0x48] sm:$0xff]
    %v302 = vld [vmem:[#allocation11 + $0x50] sm:$0xff]
    %v303 = vld [vmem:[#allocation11 + $0x58] sm:$0xff]
    %v304 = vld [vmem:[#allocation11 + $0x60] sm:$0xff]
    %v305 = vld [vmem:[#allocation11 + $0x68] sm:$0xff]
    %v306 = vld [vmem:[#allocation11 + $0x70] sm:$0xff]
    %v307 = vld [vmem:[#allocation11 + $0x78] sm:$0xff]
    %v308 = vld [vmem:[%s9] sm:$0x1]
    %v310 = vperm.slane %v308, 0
    %312 = vmatpush.msra.mxu0 %v307
    %313 = vmatpush.msra.mxu0 %v306
    %314 = vmatpush.msra.mxu0 %v305
    %315 = vmatpush.msra.mxu0 %v304
    %316 = vmatpush.msra.mxu0 %v303
    %317 = vmatpush.msra.mxu0 %v302
    %318 = vmatpush.msra.mxu0 %v301
    %319 = vmatpush.msra.mxu0 %v300
    %320 = vmatpush.msra.mxu0 %v299
    %321 = vmatpush.msra.mxu0 %v298
    %322 = vmatpush.msra.mxu0 %v297
    %323 = vmatpush.msra.mxu0 %v296
    %324 = vmatpush.msra.mxu0 %v295
    %325 = vmatpush.msra.mxu0 %v294
    %326 = vmatpush.msra.mxu0 %v293
    %327 = vmatpush.msra.mxu0 %v292
    %328 = vmatmul.f32.gmra.mxu0 %v290
    %v329 = vpop.f32.mrf.mxu0
    %v330 = vadd.f32 %v310, %v329
    %331 = vmatmul.f32.gmra.mxu0 %v291
    %v332 = vpop.f32.mrf.mxu0
    %v333 = vadd.f32 %v310, %v332
    %334 = vdwg.mxu0
    %335 = vst [vmem:[#allocation14] sm:$0xff] %v330
    %336 = vst [vmem:[#allocation14 + $0x8] sm:$0xff] %v333
    // Predicated region
    $region66: #{tpu_custom_call.1} parent=1 // pred_check
      _
    $region67: #{tpu_custom_call.1} parent=1 // pred_check_branch
      %338 = sbr.rel (0) target = $region69
    $region68: #{tpu_custom_call.1} parent=1 // pred_region
      %340 = vsyncadd [#allocation4], 0
      %s341 = sshll.u32 [#allocation13], 4
      %s342 = int_to_ptr.vmem [resolvable:$true] %s341
      %s343 = sshll.u32 %s10, 4
      %s344 = int_to_ptr.hbm [resolvable:$true] %s343
      %349 = dma.vmem_to_hbm [thread:$0]  %s342, 256, %s344, [#allocation4], 128, 128, 8
    $region69: #{tpu_custom_call.1} parent=1 // pred_fallthru
      _
    // Predicated region
    $region70: #{tpu_custom_call.1} parent=1 // pred_check
      _
    $region71: #{tpu_custom_call.1} parent=1 // pred_check_branch
      %351 = sbr.rel (0) target = $region73
    $region72: #{tpu_custom_call.1} parent=1 // pred_region
      %353 = vsyncadd [#allocation15], 0
      %s354 = sshll.u32 [#allocation14], 4
      %s355 = int_to_ptr.vmem [resolvable:$true] %s354
      %s356 = sshll.u32 %s11, 4
      %s357 = int_to_ptr.hbm [resolvable:$true] %s356
      %362 = dma.vmem_to_hbm [thread:$0]  %s355, 256, %s357, [#allocation15], 128, 128, 8
    $region73: #{tpu_custom_call.1} parent=1 // pred_fallthru
      _
    // Predicated region
    $region74: #{tpu_custom_call.1} parent=1 // pred_check
      _
    $region75: #{tpu_custom_call.1} parent=1 // pred_check_branch
      %364 = sbr.rel (0) target = $region77
    $region76: #{tpu_custom_call.1} parent=1 // pred_region
      %366 = dma.done [#allocation4], 256
    $region77: #{tpu_custom_call.1} parent=1 // pred_fallthru
      _
    // Predicated region
    $region78: #{tpu_custom_call.1} parent=1 // pred_check
      _
    $region79: #{tpu_custom_call.1} parent=1 // pred_check_branch
      %368 = sbr.rel (0) target = $region81
    $region80: #{tpu_custom_call.1} parent=1 // pred_region
      %370 = dma.done [#allocation15], 256
    $region81: #{tpu_custom_call.1} parent=1 // pred_fallthru
      _
    %371 = vsyncpa [#allocation3], 1
    %372 = vsyncpa [#allocation6], 1
    %373 = vsyncpa [#allocation9], 1
    %374 = vsyncpa [#allocation12], 1
    %375 = vsyncpa [#allocation4], 1
    %376 = vsyncpa [#allocation15], 1

</llo_original>
